<compile_context>
chip_gen: v7x
topology: tpu7x:2x2x1
jax: 0.10.0
libtpu: 0.0.40
codegen_flags: <defaults>
</compile_context>

<pallas_src>
import functools

import jax
import jax.numpy as jnp
from jax import lax
from jax.experimental import pallas as pl
from jax.experimental.pallas import tpu as pltpu


def _vsgc_mlp_kernel(a_ref, x_ref, w1_ref, b1_ref, w2_ref, b2_ref, o_ref,
                     *, num_layers, alpha, lambd):
    # Load the (bf16) adjacency once; it is reused by every propagation step.
    a = a_ref[...]

    # ---- MLPLayer: relu(X @ W1 + b1) ----  (bf16 MXU operands, f32 accum)
    h1 = jnp.dot(x_ref[...], w1_ref[...], preferred_element_type=jnp.float32)
    h1 = jnp.maximum(h1 + b1_ref[...], 0.0)

    # ---- VSGCLayerPre linear: h0 = h1 @ W2 + b2 ----
    h0 = jnp.dot(h1.astype(w2_ref.dtype), w2_ref[...],
                 preferred_element_type=jnp.float32) + b2_ref[...]

    # ---- VSGC propagation, h carried in vregs, fully unrolled ----
    coef = 1.0 / (1.0 + alpha * lambd)
    c_h = coef * (1.0 - alpha)      # Python floats folded at trace time
    c_ah = coef * alpha * lambd
    c_h0 = coef * alpha

    def body(_, h):
        ah = jnp.dot(a, h.astype(a.dtype), preferred_element_type=jnp.float32)
        new_h = c_ah * ah + c_h0 * h0
        if alpha != 1.0:            # trace-time special case: drop zero term
            new_h = new_h + c_h * h
        return new_h

    h = lax.fori_loop(0, num_layers, body, h0, unroll=True)

    o_ref[...] = h.astype(o_ref.dtype)


def vsgc_mlp_net(a_hat, x, w1, b1, w2, b2, *, num_layers, alpha=1.0, lambd=1.0):
    n, f = x.shape
    hdim = w1.shape[1]
    c = w2.shape[1]

    # ---- lane/sublane padding: dense vregs + unmasked stores ----
    LANE, SUB = 128, 8
    n_pad = -(-n // SUB) * SUB
    h_pad = -(-hdim // LANE) * LANE
    c_pad = -(-c // LANE) * LANE

    a_p = jnp.zeros((n_pad, n_pad), jnp.float32).at[:n, :n].set(a_hat)
    x_p = jnp.zeros((n_pad, f), jnp.float32).at[:n, :].set(x)
    w1_p = jnp.zeros((f, h_pad), jnp.float32).at[:, :hdim].set(w1)
    b1_p = jnp.zeros((h_pad,), jnp.float32).at[:hdim].set(b1)
    w2_p = jnp.zeros((h_pad, c_pad), jnp.float32).at[:hdim, :c].set(w2)
    b2_p = jnp.zeros((c_pad,), jnp.float32).at[:c].set(b2)

    # bf16 MXU operands; biases stay f32 (added post-accumulation).
    a_b = a_p.astype(jnp.bfloat16)
    x_b = x_p.astype(jnp.bfloat16)
    w1_b = w1_p.astype(jnp.bfloat16)
    w2_b = w2_p.astype(jnp.bfloat16)
    b1_2d = b1_p.reshape(1, h_pad)
    b2_2d = b2_p.reshape(1, c_pad)

    kernel = functools.partial(
        _vsgc_mlp_kernel,
        num_layers=int(num_layers),
        alpha=float(alpha),
        lambd=float(lambd),
    )

    def full(arr):
        return pl.BlockSpec(arr.shape, lambda: (0,) * arr.ndim)

    flops = int(2 * n_pad * f * h_pad
                + 2 * n_pad * h_pad * c_pad
                + num_layers * (2 * n_pad * n_pad * c_pad + 4 * n_pad * c_pad))
    bytes_accessed = int(2 * (a_b.size + x_b.size + w1_b.size + w2_b.size)
                         + 4 * (b1_2d.size + b2_2d.size + n_pad * c_pad))

    out = pl.pallas_call(
        kernel,
        out_shape=jax.ShapeDtypeStruct((n_pad, c_pad), jnp.float32),
        grid=(),
        in_specs=[full(a_b), full(x_b), full(w1_b), full(b1_2d),
                  full(w2_b), full(b2_2d)],
        out_specs=pl.BlockSpec((n_pad, c_pad), lambda: (0, 0)),
        compiler_params=pltpu.CompilerParams(
            vmem_limit_bytes=32 * 1024 * 1024),
        cost_estimate=pl.CostEstimate(flops=flops, transcendentals=0,
                                      bytes_accessed=bytes_accessed),
    )(a_b, x_b, w1_b, b1_2d, w2_b, b2_2d)

    return out[:n, :c]


def _reference(a_hat, x, w1, b1, w2, b2, num_layers, alpha, lambd,
               mxu_dtype=jnp.bfloat16):
    """Pure-JAX reference. mxu_dtype=bfloat16 mirrors the kernel numerics
    (bf16 matmul operands, f32 accumulation); float32 gives the full-precision
    module semantics for a looser sanity check."""
    def dot(p, q):
        return jnp.dot(p.astype(mxu_dtype), q.astype(mxu_dtype),
                       preferred_element_type=jnp.float32)

    h1 = jnp.maximum(dot(x, w1) + b1, 0.0)
    h0 = dot(h1, w2) + b2
    coef = 1.0 / (1.0 + alpha * lambd)
    h = h0
    for _ in range(num_layers):
        h = coef * ((1.0 - alpha) * h + alpha * lambd * dot(a_hat, h)
                    + alpha * h0)
    return h


if __name__ == "__main__":
    # Small synthetic problem: N=16 nodes, num_feats=8, num_hidden=32, num_classes=4.
    N, F, H, C = 16, 8, 32, 4
    num_layers, alpha, lambd = 3, 1.0, 1.0

    key = jax.random.PRNGKey(0)
    k_adj, k_x, k_w1, k_b1, k_w2, k_b2 = jax.random.split(key, 6)

    # Deterministic random undirected graph -> symmetric normalized adjacency.
    rand = jax.random.uniform(k_adj, (N, N))
    adj = (rand + rand.T) * 0.5 > 0.7
    adj = adj.astype(jnp.float32)
    adj = adj * (1.0 - jnp.eye(N)) + jnp.eye(N)          # add self-loops
    deg = jnp.sum(adj, axis=1)
    d_inv_sqrt = 1.0 / jnp.sqrt(deg)
    a_hat = adj * d_inv_sqrt[:, None] * d_inv_sqrt[None, :]

    # Node features and deterministic parameter init (Linear-style scaling).
    x = jax.random.normal(k_x, (N, F), dtype=jnp.float32)
    w1 = jax.random.uniform(k_w1, (F, H), minval=-1.0, maxval=1.0) / jnp.sqrt(F)
    b1 = jax.random.uniform(k_b1, (H,), minval=-1.0, maxval=1.0) / jnp.sqrt(F)
    w2 = jax.random.uniform(k_w2, (H, C), minval=-1.0, maxval=1.0) / jnp.sqrt(H)
    b2 = jax.random.uniform(k_b2, (C,), minval=-1.0, maxval=1.0) / jnp.sqrt(H)

    out = vsgc_mlp_net(a_hat, x, w1, b1, w2, b2,
                       num_layers=num_layers, alpha=alpha, lambd=lambd)
    out = jax.block_until_ready(out)
    assert out.shape == (N, C)

    # Tight check vs a reference that mirrors the kernel's bf16/f32 numerics.
    ref_bf16 = _reference(a_hat, x, w1, b1, w2, b2, num_layers, alpha, lambd,
                          mxu_dtype=jnp.bfloat16)
    assert jnp.allclose(out, ref_bf16, atol=1e-4, rtol=1e-4), \
        "mismatch vs bf16-mirrored reference"

    # Loose sanity check vs the full-f32 module semantics (bf16 quantization
    # of the MXU operands is the only deviation).
    ref_f32 = _reference(a_hat, x, w1, b1, w2, b2, num_layers, alpha, lambd,
                         mxu_dtype=jnp.float32)
    assert jnp.allclose(out, ref_f32, atol=5e-2, rtol=5e-2), \
        "mismatch vs f32 reference"

    print("KERNEL_OK")
</pallas_src>

<mosaic_0001>
module attributes {stable_mosaic.version = 11 : i64} {
  func.func @_vsgc_mlp_kernel(%arg0: memref<16x16xbf16, #tpu.memory_space<vmem>>, %arg1: memref<16x8xbf16, #tpu.memory_space<vmem>>, %arg2: memref<8x128xbf16, #tpu.memory_space<vmem>>, %arg3: memref<1x128xf32, #tpu.memory_space<vmem>>, %arg4: memref<128x128xbf16, #tpu.memory_space<vmem>>, %arg5: memref<1x128xf32, #tpu.memory_space<vmem>>, %arg6: memref<16x128xf32, #tpu.memory_space<vmem>>) attributes {dimension_semantics = [], scalar_prefetch = 0 : i64, scratch_operands = 0 : i64, tpu.core_type = #tpu.core_type<tc>} {
    %c0 = arith.constant 0 : index
    %c0_0 = arith.constant 0 : index
    %0 = vector.load %arg0[%c0, %c0_0] : memref<16x16xbf16, #tpu.memory_space<vmem>>, vector<16x16xbf16>
    %c0_1 = arith.constant 0 : index
    %c0_2 = arith.constant 0 : index
    %1 = vector.load %arg1[%c0_1, %c0_2] : memref<16x8xbf16, #tpu.memory_space<vmem>>, vector<16x8xbf16>
    %c0_3 = arith.constant 0 : index
    %c0_4 = arith.constant 0 : index
    %2 = vector.load %arg2[%c0_3, %c0_4] : memref<8x128xbf16, #tpu.memory_space<vmem>>, vector<8x128xbf16>
    %cst = arith.constant dense<0.000000e+00> : vector<16x128xf32>
    %3 = tpu.matmul %1, %2, %cst {dimension_numbers = #tpu.dot_dimension_numbers<[1], [0], [0], [1], [0, 0, 1, 1], [], []>} : vector<16x8xbf16>, vector<8x128xbf16>, vector<16x128xf32> -> vector<16x128xf32>
    %c0_5 = arith.constant 0 : index
    %c0_6 = arith.constant 0 : index
    %4 = vector.load %arg3[%c0_5, %c0_6] : memref<1x128xf32, #tpu.memory_space<vmem>>, vector<1x128xf32>
    %5 = vector.broadcast %4 : vector<1x128xf32> to vector<16x128xf32>
    %6 = arith.addf %3, %5 : vector<16x128xf32>
    %cst_7 = arith.constant 0.000000e+00 : f32
    %7 = vector.broadcast %cst_7 : f32 to vector<16x128xf32>
    %8 = arith.maximumf %6, %7 : vector<16x128xf32>
    %9 = arith.truncf %8 : vector<16x128xf32> to vector<16x128xbf16>
    %c0_8 = arith.constant 0 : index
    %c0_9 = arith.constant 0 : index
    %10 = vector.load %arg4[%c0_8, %c0_9] : memref<128x128xbf16, #tpu.memory_space<vmem>>, vector<128x128xbf16>
    %cst_10 = arith.constant dense<0.000000e+00> : vector<16x128xf32>
    %11 = tpu.matmul %9, %10, %cst_10 {dimension_numbers = #tpu.dot_dimension_numbers<[1], [0], [0], [1], [0, 0, 1, 1], [], []>} : vector<16x128xbf16>, vector<128x128xbf16>, vector<16x128xf32> -> vector<16x128xf32>
    %c0_11 = arith.constant 0 : index
    %c0_12 = arith.constant 0 : index
    %12 = vector.load %arg5[%c0_11, %c0_12] : memref<1x128xf32, #tpu.memory_space<vmem>>, vector<1x128xf32>
    %13 = vector.broadcast %12 : vector<1x128xf32> to vector<16x128xf32>
    %14 = arith.addf %11, %13 : vector<16x128xf32>
    %c0_i32 = arith.constant 0 : i32
    %15 = arith.truncf %14 : vector<16x128xf32> to vector<16x128xbf16>
    %cst_13 = arith.constant dense<0.000000e+00> : vector<16x128xf32>
    %16 = tpu.matmul %0, %15, %cst_13 {dimension_numbers = #tpu.dot_dimension_numbers<[1], [0], [0], [1], [0, 0, 1, 1], [], []>} : vector<16x16xbf16>, vector<16x128xbf16>, vector<16x128xf32> -> vector<16x128xf32>
    %cst_14 = arith.constant 5.000000e-01 : f32
    %17 = vector.broadcast %cst_14 : f32 to vector<16x128xf32>
    %18 = arith.mulf %17, %16 : vector<16x128xf32>
    %cst_15 = arith.constant 5.000000e-01 : f32
    %19 = vector.broadcast %cst_15 : f32 to vector<16x128xf32>
    %20 = arith.mulf %19, %14 : vector<16x128xf32>
    %21 = arith.addf %18, %20 : vector<16x128xf32>
    %c1_i32 = arith.constant 1 : i32
    %22 = arith.truncf %21 : vector<16x128xf32> to vector<16x128xbf16>
    %cst_16 = arith.constant dense<0.000000e+00> : vector<16x128xf32>
    %23 = tpu.matmul %0, %22, %cst_16 {dimension_numbers = #tpu.dot_dimension_numbers<[1], [0], [0], [1], [0, 0, 1, 1], [], []>} : vector<16x16xbf16>, vector<16x128xbf16>, vector<16x128xf32> -> vector<16x128xf32>
    %cst_17 = arith.constant 5.000000e-01 : f32
    %24 = vector.broadcast %cst_17 : f32 to vector<16x128xf32>
    %25 = arith.mulf %24, %23 : vector<16x128xf32>
    %cst_18 = arith.constant 5.000000e-01 : f32
    %26 = vector.broadcast %cst_18 : f32 to vector<16x128xf32>
    %27 = arith.mulf %26, %14 : vector<16x128xf32>
    %28 = arith.addf %25, %27 : vector<16x128xf32>
    %c2_i32 = arith.constant 2 : i32
    %29 = arith.truncf %28 : vector<16x128xf32> to vector<16x128xbf16>
    %cst_19 = arith.constant dense<0.000000e+00> : vector<16x128xf32>
    %30 = tpu.matmul %0, %29, %cst_19 {dimension_numbers = #tpu.dot_dimension_numbers<[1], [0], [0], [1], [0, 0, 1, 1], [], []>} : vector<16x16xbf16>, vector<16x128xbf16>, vector<16x128xf32> -> vector<16x128xf32>
    %cst_20 = arith.constant 5.000000e-01 : f32
    %31 = vector.broadcast %cst_20 : f32 to vector<16x128xf32>
    %32 = arith.mulf %31, %30 : vector<16x128xf32>
    %cst_21 = arith.constant 5.000000e-01 : f32
    %33 = vector.broadcast %cst_21 : f32 to vector<16x128xf32>
    %34 = arith.mulf %33, %14 : vector<16x128xf32>
    %35 = arith.addf %32, %34 : vector<16x128xf32>
    %c0_22 = arith.constant 0 : index
    %c0_23 = arith.constant 0 : index
    %36 = vector.load %arg6[%c0_22, %c0_23] : memref<16x128xf32, #tpu.memory_space<vmem>>, vector<16x128xf32>
    tpu.vector_store %arg6[%c0_22, %c0_23], %35 {strides = array<i32>} : memref<16x128xf32, #tpu.memory_space<vmem>>, vector<16x128xf32>,
    return
  }
}

</mosaic_0001>

<llo_original>
// kernel: tpu_custom_call.1
$region0: #{tpu_custom_call.1}
  #allocation0 [shape = 'u32[]', space=smem, size = 0x4, offset = 0x4, fixed_abs, tag = 'smem constant byte address 0x4 - core index']
  #allocation1 [shape = 'u32[144,128]{1,0:T(1,128)}', space=vmem, size = 0x12000, scoped, tag = 'internal scratch']
  %s0 = inlined_call_operand.vmem [shape: bf16[16,16], index: 0, kind: input, shape index: {}]
  %s1 = inlined_call_operand.vmem [shape: bf16[16,8], index: 1, kind: input, shape index: {}]
  %s2 = inlined_call_operand.vmem [shape: bf16[8,128], index: 2, kind: input, shape index: {}]
  %s3 = inlined_call_operand.vmem [shape: f32[1,128], index: 3, kind: input, shape index: {}]
  %s4 = inlined_call_operand.hbm [shape: bf16[128,128], index: 4, kind: input, shape index: {}]
  %s5 = inlined_call_operand.vmem [shape: f32[1,128], index: 5, kind: input, shape index: {}]
  %s6 = inlined_call_operand.hbm [shape: f32[16,128], index: 6, kind: output, shape index: {}]
  %s7 = sld [smem:[#allocation0]]
  $region38: #{tpu_custom_call.1} parent=0
    _
  %s9 = ssub.s32 1, %s7
  %s10 = scalar_select 0, %s9, %s7
  $region1: #{tpu_custom_call.1} parent=0
    #allocation2 [shape = 'u8[32768]{0}', space=vmem, size = 0x8000, scoped, tag = 'input window, operand 4, single buffered']
    #allocation3 [shape = 's32[1]{0}', space=sflag, size = 0x4, scoped, tag = 'scoped memory for tpu_custom_call.1']
    #allocation4 [shape = 's32[1]{0}', space=sflag, size = 0x4, scoped, tag = 'scoped memory for tpu_custom_call.1']
    #allocation5 [shape = 'u8[8192]{0}', space=vmem, size = 0x2000, scoped, tag = 'output window, operand 0, single buffered']
    %11 = vsyncpa [#allocation3], 0
    %12 = vsyncpa [#allocation4], 0
    // Predicated region
    $region2: #{tpu_custom_call.1} parent=1 // pred_check
      _
    $region3: #{tpu_custom_call.1} parent=1 // pred_check_branch
      %14 = sbr.rel (0) target = $region5
    $region4: #{tpu_custom_call.1} parent=1 // pred_region
      _
    $region5: #{tpu_custom_call.1} parent=1 // pred_fallthru
      _
    // Predicated region
    $region6: #{tpu_custom_call.1} parent=1 // pred_check
      _
    $region7: #{tpu_custom_call.1} parent=1 // pred_check_branch
      %16 = sbr.rel (0) target = $region9
    $region8: #{tpu_custom_call.1} parent=1 // pred_region
      _
    $region9: #{tpu_custom_call.1} parent=1 // pred_fallthru
      _
    // Predicated region
    $region10: #{tpu_custom_call.1} parent=1 // pred_check
      _
    $region11: #{tpu_custom_call.1} parent=1 // pred_check_branch
      %18 = sbr.rel (0) target = $region13
    $region12: #{tpu_custom_call.1} parent=1 // pred_region
      _
    $region13: #{tpu_custom_call.1} parent=1 // pred_fallthru
      _
    // Predicated region
    $region14: #{tpu_custom_call.1} parent=1 // pred_check
      _
    $region15: #{tpu_custom_call.1} parent=1 // pred_check_branch
      %20 = sbr.rel (0) target = $region17
    $region16: #{tpu_custom_call.1} parent=1 // pred_region
      _
    $region17: #{tpu_custom_call.1} parent=1 // pred_fallthru
      _
    // Predicated region
    $region18: #{tpu_custom_call.1} parent=1 // pred_check
      _
    $region19: #{tpu_custom_call.1} parent=1 // pred_check_branch
      %22 = sbr.rel (0) target = $region21
    $region20: #{tpu_custom_call.1} parent=1 // pred_region
      %s24 = ssub.s32 1024, 1024
      %25 = vsyncadd [#allocation3], %s24
      %s26 = sshll.u32 [#allocation2], 4
      %s27 = int_to_ptr.vmem [resolvable:$true] %s26
      %32 = dma.hbm_to_vmem [thread:$0]  %s4, 1024, %s27, [#allocation3], 64, 64, 4
    $region21: #{tpu_custom_call.1} parent=1 // pred_fallthru
      _
    // Predicated region
    $region22: #{tpu_custom_call.1} parent=1 // pred_check
      _
    $region23: #{tpu_custom_call.1} parent=1 // pred_check_branch
      %34 = sbr.rel (0) target = $region25
    $region24: #{tpu_custom_call.1} parent=1 // pred_region
      _
    $region25: #{tpu_custom_call.1} parent=1 // pred_fallthru
      _
    // Predicated region
    $region26: #{tpu_custom_call.1} parent=1 // pred_check
      _
    $region27: #{tpu_custom_call.1} parent=1 // pred_check_branch
      %36 = sbr.rel (0) target = $region29
    $region28: #{tpu_custom_call.1} parent=1 // pred_region
      %37 = dma.done [#allocation3], 1024
    $region29: #{tpu_custom_call.1} parent=1 // pred_fallthru
      _
    %v39 = vld [vmem:[%s0] sm:$0xf]
    %v40 = vld [vmem:[%s0 + $0x4] sm:$0xf]
    %v41 = vld [vmem:[%s1] sm:$0xf]
    %v42 = vld [vmem:[%s1 + $0x4] sm:$0xf]
    %v43 = vld [vmem:[%s2] sm:$0xf]
    %v44 = vld [vmem:[%s3] sm:$0x1]
    %v46 = vlaneseq
    %v47 = vshrl.u32 %v46, 7
    %v48 = vsub.s32 0, %v47
    %v49 = vrot.slane %v44, %v48
    %v53 = vunpack.c.l.b16 %v41
    %v54 = vunpack.c.l.b16 %v42
    %v55 = vpack.c.b16 %v54, %v53
    %vm56 = vcmask 64512
    %v58 = vsel %vm56, %v55, 0
    %vm60 = vcmask 1043456
    %v62 = vsel %vm60, %v43, 0
    %64 = vmatprep.subr.bf16.mxu0 0
    %65 = vmatpush1.bf16.msra.mxu0 %v62
    %66 = vmatprep.subr.bf16.mxu0 0
    %67 = vmatpush1.bf16.msra.mxu0 0
    %68 = vmatprep.subr.bf16.mxu0 0
    %69 = vmatpush1.bf16.msra.mxu0 0
    %70 = vmatprep.subr.bf16.mxu0 0
    %71 = vmatpush1.bf16.msra.mxu0 0
    %72 = vmatprep.subr.bf16.mxu0 0
    %73 = vmatpush1.bf16.msra.mxu0 0
    %74 = vmatprep.subr.bf16.mxu0 0
    %75 = vmatpush1.bf16.msra.mxu0 0
    %76 = vmatprep.subr.bf16.mxu0 0
    %77 = vmatpush1.bf16.msra.mxu0 0
    %78 = vmatprep.subr.bf16.mxu0 0
    %79 = vmatpush1.bf16.msra.mxu0 0
    %80 = vmatprep.subr.bf16.mxu0 0
    %81 = vmatpush1.bf16.msra.mxu0 0
    %82 = vmatprep.subr.bf16.mxu0 0
    %83 = vmatpush1.bf16.msra.mxu0 0
    %84 = vmatprep.subr.bf16.mxu0 0
    %85 = vmatpush1.bf16.msra.mxu0 0
    %86 = vmatprep.subr.bf16.mxu0 0
    %87 = vmatpush1.bf16.msra.mxu0 0
    %88 = vmatprep.subr.bf16.mxu0 0
    %89 = vmatpush1.bf16.msra.mxu0 0
    %90 = vmatprep.subr.bf16.mxu0 0
    %91 = vmatpush1.bf16.msra.mxu0 0
    %92 = vmatprep.subr.bf16.mxu0 0
    %93 = vmatpush1.bf16.msra.mxu0 0
    %94 = vmatprep.subr.bf16.mxu0 0
    %95 = vmatpush1.bf16.msra.mxu0 0
    %96 = vmatprep.mubr.bf16.mxu0 0
    %97 = vmatmul.mubr.bf16.gmra.mrb[0].mxu0 %v58
    %v98 = vpop.f32.mrb[0].mxu0
    %v99 = vadd.f32 %v49, %v98
    %v100 = vpop.f32.mrb[0].mxu0
    %v101 = vpop.f32.mrb[0].mxu0
    %v102 = vadd.f32 %v49, %v101
    %v103 = vpop.f32.mrb[0].mxu0
    %104 = vdwg.mxu0
    %v105 = vmax.f32 %v99, 0.0
    %v106 = vmax.f32 %v102, 0.0
    %v107 = vpack.c.bf16 %v106, %v105
    %v108 = vld [vmem:[#allocation2] sm:$0xf]
    %v109 = vld [vmem:[#allocation2 + $0x4] sm:$0xf]
    %v110 = vld [vmem:[#allocation2 + $0x8] sm:$0xf]
    %v111 = vld [vmem:[#allocation2 + $0xc] sm:$0xf]
    %v112 = vld [vmem:[#allocation2 + $0x10] sm:$0xf]
    %v113 = vld [vmem:[#allocation2 + $0x14] sm:$0xf]
    %v114 = vld [vmem:[#allocation2 + $0x18] sm:$0xf]
    %v115 = vld [vmem:[#allocation2 + $0x1c] sm:$0xf]
    %v116 = vld [vmem:[#allocation2 + $0x20] sm:$0xf]
    %v117 = vld [vmem:[#allocation2 + $0x24] sm:$0xf]
    %v118 = vld [vmem:[#allocation2 + $0x28] sm:$0xf]
    %v119 = vld [vmem:[#allocation2 + $0x2c] sm:$0xf]
    %v120 = vld [vmem:[#allocation2 + $0x30] sm:$0xf]
    %v121 = vld [vmem:[#allocation2 + $0x34] sm:$0xf]
    %v122 = vld [vmem:[#allocation2 + $0x38] sm:$0xf]
    %v123 = vld [vmem:[#allocation2 + $0x3c] sm:$0xf]
    %v124 = vld [vmem:[%s5] sm:$0x1]
    %v126 = vlaneseq
    %v127 = vshrl.u32 %v126, 7
    %v128 = vsub.s32 0, %v127
    %v129 = vrot.slane %v124, %v128
    %v147 = vunpack.c.l.b16 %v108
    %v148 = vunpack.c.l.b16 %v109
    %v149 = vunpack.c.l.b16 %v110
    %v150 = vunpack.c.l.b16 %v111
    %v151 = vunpack.c.l.b16 %v112
    %v152 = vunpack.c.l.b16 %v113
    %v153 = vunpack.c.l.b16 %v114
    %v154 = vunpack.c.l.b16 %v115
    %v155 = vunpack.c.l.b16 %v116
    %v156 = vunpack.c.l.b16 %v117
    %v157 = vunpack.c.l.b16 %v118
    %v158 = vunpack.c.l.b16 %v119
    %v159 = vunpack.c.l.b16 %v120
    %v160 = vunpack.c.l.b16 %v121
    %v161 = vunpack.c.l.b16 %v122
    %v162 = vunpack.c.l.b16 %v123
    %v163 = vpack.c.b16 %v148, %v147
    %v164 = vpack.c.b16 %v150, %v149
    %v165 = vpack.c.b16 %v152, %v151
    %v166 = vpack.c.b16 %v154, %v153
    %v167 = vpack.c.b16 %v156, %v155
    %v168 = vpack.c.b16 %v158, %v157
    %v169 = vpack.c.b16 %v160, %v159
    %v170 = vpack.c.b16 %v162, %v161
    %179 = vmatprep.subr.bf16.mxu0 0
    %180 = vmatpush1.bf16.msra.mxu0 %v163
    %181 = vmatprep.subr.bf16.mxu0 0
    %182 = vmatpush1.bf16.msra.mxu0 %v164
    %183 = vmatprep.subr.bf16.mxu0 0
    %184 = vmatpush1.bf16.msra.mxu0 %v165
    %185 = vmatprep.subr.bf16.mxu0 0
    %186 = vmatpush1.bf16.msra.mxu0 %v166
    %187 = vmatprep.subr.bf16.mxu0 0
    %188 = vmatpush1.bf16.msra.mxu0 %v167
    %189 = vmatprep.subr.bf16.mxu0 0
    %190 = vmatpush1.bf16.msra.mxu0 %v168
    %191 = vmatprep.subr.bf16.mxu0 0
    %192 = vmatpush1.bf16.msra.mxu0 %v169
    %193 = vmatprep.subr.bf16.mxu0 0
    %194 = vmatpush1.bf16.msra.mxu0 %v170
    %195 = vmatprep.subr.bf16.mxu0 0
    %196 = vmatpush1.bf16.msra.mxu0 0
    %197 = vmatprep.subr.bf16.mxu0 0
    %198 = vmatpush1.bf16.msra.mxu0 0
    %199 = vmatprep.subr.bf16.mxu0 0
    %200 = vmatpush1.bf16.msra.mxu0 0
    %201 = vmatprep.subr.bf16.mxu0 0
    %202 = vmatpush1.bf16.msra.mxu0 0
    %203 = vmatprep.subr.bf16.mxu0 0
    %204 = vmatpush1.bf16.msra.mxu0 0
    %205 = vmatprep.subr.bf16.mxu0 0
    %206 = vmatpush1.bf16.msra.mxu0 0
    %207 = vmatprep.subr.bf16.mxu0 0
    %208 = vmatpush1.bf16.msra.mxu0 0
    %209 = vmatprep.subr.bf16.mxu0 0
    %210 = vmatpush1.bf16.msra.mxu0 0
    %211 = vmatprep.mubr.bf16.mxu0 0
    %212 = vmatmul.mubr.bf16.gmra.mrb[0].mxu0 %v107
    %v213 = vpop.f32.mrb[0].mxu0
    %v214 = vadd.f32 %v129, %v213
    %v215 = vpop.f32.mrb[0].mxu0
    %v216 = vpop.f32.mrb[0].mxu0
    %v217 = vadd.f32 %v129, %v216
    %v218 = vpop.f32.mrb[0].mxu0
    %219 = vdwg.mxu0
    %v220 = vpack.c.bf16 %v217, %v214
    %v223 = vunpack.c.l.b16 %v39
    %v224 = vunpack.c.l.b16 %v40
    %v225 = vpack.c.b16 %v224, %v223
    %vm226 = vcmask 130048
    %v228 = vsel %vm226, %v225, 0
    %230 = vmatprep.subr.bf16.mxu0 0
    %231 = vmatpush1.bf16.msra.mxu0 %v220
    %232 = vmatprep.subr.bf16.mxu0 0
    %233 = vmatpush1.bf16.msra.mxu0 0
    %234 = vmatprep.subr.bf16.mxu0 0
    %235 = vmatpush1.bf16.msra.mxu0 0
    %236 = vmatprep.subr.bf16.mxu0 0
    %237 = vmatpush1.bf16.msra.mxu0 0
    %238 = vmatprep.subr.bf16.mxu0 0
    %239 = vmatpush1.bf16.msra.mxu0 0
    %240 = vmatprep.subr.bf16.mxu0 0
    %241 = vmatpush1.bf16.msra.mxu0 0
    %242 = vmatprep.subr.bf16.mxu0 0
    %243 = vmatpush1.bf16.msra.mxu0 0
    %244 = vmatprep.subr.bf16.mxu0 0
    %245 = vmatpush1.bf16.msra.mxu0 0
    %246 = vmatprep.subr.bf16.mxu0 0
    %247 = vmatpush1.bf16.msra.mxu0 0
    %248 = vmatprep.subr.bf16.mxu0 0
    %249 = vmatpush1.bf16.msra.mxu0 0
    %250 = vmatprep.subr.bf16.mxu0 0
    %251 = vmatpush1.bf16.msra.mxu0 0
    %252 = vmatprep.subr.bf16.mxu0 0
    %253 = vmatpush1.bf16.msra.mxu0 0
    %254 = vmatprep.subr.bf16.mxu0 0
    %255 = vmatpush1.bf16.msra.mxu0 0
    %256 = vmatprep.subr.bf16.mxu0 0
    %257 = vmatpush1.bf16.msra.mxu0 0
    %258 = vmatprep.subr.bf16.mxu0 0
    %259 = vmatpush1.bf16.msra.mxu0 0
    %260 = vmatprep.subr.bf16.mxu0 0
    %261 = vmatpush1.bf16.msra.mxu0 0
    %262 = vmatprep.mubr.bf16.mxu0 0
    %263 = vmatmul.mubr.bf16.gmra.mrb[0].mxu0 %v228
    %v264 = vpop.f32.mrb[0].mxu0
    %v265 = vadd.f32 0.0, %v264
    %v266 = vpop.f32.mrb[0].mxu0
    %v267 = vpop.f32.mrb[0].mxu0
    %v268 = vadd.f32 0.0, %v267
    %v269 = vpop.f32.mrb[0].mxu0
    %270 = vdwg.mxu0
    %v271 = vmul.f32 %v265, 0.5
    %v272 = vmul.f32 %v268, 0.5
    %v273 = vmul.f32 %v214, 0.5
    %v274 = vmul.f32 %v217, 0.5
    %v275 = vadd.f32 %v271, %v273
    %v276 = vadd.f32 %v272, %v274
    %v277 = vpack.c.bf16 %v276, %v275
    %278 = vmatprep.subr.bf16.mxu0 0
    %279 = vmatpush1.bf16.msra.mxu0 %v277
    %280 = vmatprep.subr.bf16.mxu0 0
    %281 = vmatpush1.bf16.msra.mxu0 0
    %282 = vmatprep.subr.bf16.mxu0 0
    %283 = vmatpush1.bf16.msra.mxu0 0
    %284 = vmatprep.subr.bf16.mxu0 0
    %285 = vmatpush1.bf16.msra.mxu0 0
    %286 = vmatprep.subr.bf16.mxu0 0
    %287 = vmatpush1.bf16.msra.mxu0 0
    %288 = vmatprep.subr.bf16.mxu0 0
    %289 = vmatpush1.bf16.msra.mxu0 0
    %290 = vmatprep.subr.bf16.mxu0 0
    %291 = vmatpush1.bf16.msra.mxu0 0
    %292 = vmatprep.subr.bf16.mxu0 0
    %293 = vmatpush1.bf16.msra.mxu0 0
    %294 = vmatprep.subr.bf16.mxu0 0
    %295 = vmatpush1.bf16.msra.mxu0 0
    %296 = vmatprep.subr.bf16.mxu0 0
    %297 = vmatpush1.bf16.msra.mxu0 0
    %298 = vmatprep.subr.bf16.mxu0 0
    %299 = vmatpush1.bf16.msra.mxu0 0
    %300 = vmatprep.subr.bf16.mxu0 0
    %301 = vmatpush1.bf16.msra.mxu0 0
    %302 = vmatprep.subr.bf16.mxu0 0
    %303 = vmatpush1.bf16.msra.mxu0 0
    %304 = vmatprep.subr.bf16.mxu0 0
    %305 = vmatpush1.bf16.msra.mxu0 0
    %306 = vmatprep.subr.bf16.mxu0 0
    %307 = vmatpush1.bf16.msra.mxu0 0
    %308 = vmatprep.subr.bf16.mxu0 0
    %309 = vmatpush1.bf16.msra.mxu0 0
    %310 = vmatprep.mubr.bf16.mxu0 0
    %311 = vmatmul.mubr.bf16.gmra.mrb[0].mxu0 %v228
    %v312 = vpop.f32.mrb[0].mxu0
    %v313 = vadd.f32 0.0, %v312
    %v314 = vpop.f32.mrb[0].mxu0
    %v315 = vpop.f32.mrb[0].mxu0
    %v316 = vadd.f32 0.0, %v315
    %v317 = vpop.f32.mrb[0].mxu0
    %318 = vdwg.mxu0
    %v319 = vmul.f32 %v313, 0.5
    %v320 = vmul.f32 %v316, 0.5
    %v321 = vadd.f32 %v319, %v273
    %v322 = vadd.f32 %v320, %v274
    %v323 = vpack.c.bf16 %v322, %v321
    %324 = vmatprep.subr.bf16.mxu0 0
    %325 = vmatpush1.bf16.msra.mxu0 %v323
    %326 = vmatprep.subr.bf16.mxu0 0
    %327 = vmatpush1.bf16.msra.mxu0 0
    %328 = vmatprep.subr.bf16.mxu0 0
    %329 = vmatpush1.bf16.msra.mxu0 0
    %330 = vmatprep.subr.bf16.mxu0 0
    %331 = vmatpush1.bf16.msra.mxu0 0
    %332 = vmatprep.subr.bf16.mxu0 0
    %333 = vmatpush1.bf16.msra.mxu0 0
    %334 = vmatprep.subr.bf16.mxu0 0
    %335 = vmatpush1.bf16.msra.mxu0 0
    %336 = vmatprep.subr.bf16.mxu0 0
    %337 = vmatpush1.bf16.msra.mxu0 0
    %338 = vmatprep.subr.bf16.mxu0 0
    %339 = vmatpush1.bf16.msra.mxu0 0
    %340 = vmatprep.subr.bf16.mxu0 0
    %341 = vmatpush1.bf16.msra.mxu0 0
    %342 = vmatprep.subr.bf16.mxu0 0
    %343 = vmatpush1.bf16.msra.mxu0 0
    %344 = vmatprep.subr.bf16.mxu0 0
    %345 = vmatpush1.bf16.msra.mxu0 0
    %346 = vmatprep.subr.bf16.mxu0 0
    %347 = vmatpush1.bf16.msra.mxu0 0
    %348 = vmatprep.subr.bf16.mxu0 0
    %349 = vmatpush1.bf16.msra.mxu0 0
    %350 = vmatprep.subr.bf16.mxu0 0
    %351 = vmatpush1.bf16.msra.mxu0 0
    %352 = vmatprep.subr.bf16.mxu0 0
    %353 = vmatpush1.bf16.msra.mxu0 0
    %354 = vmatprep.subr.bf16.mxu0 0
    %355 = vmatpush1.bf16.msra.mxu0 0
    %356 = vmatprep.mubr.bf16.mxu0 0
    %357 = vmatmul.mubr.bf16.gmra.mrb[0].mxu0 %v228
    %v358 = vpop.f32.mrb[0].mxu0
    %v359 = vadd.f32 0.0, %v358
    %v360 = vpop.f32.mrb[0].mxu0
    %v361 = vpop.f32.mrb[0].mxu0
    %v362 = vadd.f32 0.0, %v361
    %v363 = vpop.f32.mrb[0].mxu0
    %364 = vdwg.mxu0
    %v365 = vmul.f32 %v359, 0.5
    %v366 = vmul.f32 %v362, 0.5
    %v367 = vadd.f32 %v365, %v273
    %v368 = vadd.f32 %v366, %v274
    %369 = vst [vmem:[#allocation5] sm:$0xff] %v367
    %370 = vst [vmem:[#allocation5 + $0x8] sm:$0xff] %v368
    // Predicated region
    $region30: #{tpu_custom_call.1} parent=1 // pred_check
      _
    $region31: #{tpu_custom_call.1} parent=1 // pred_check_branch
      %372 = sbr.rel (0) target = $region33
    $region32: #{tpu_custom_call.1} parent=1 // pred_region
      %s374 = ssub.s32 256, 256
      %375 = vsyncadd [#allocation4], %s374
      %s376 = sshll.u32 [#allocation5], 4
      %s377 = int_to_ptr.vmem [resolvable:$true] %s376
      %382 = dma.vmem_to_hbm [thread:$0]  %s377, 256, %s6, [#allocation4], 128, 128, 8
    $region33: #{tpu_custom_call.1} parent=1 // pred_fallthru
      _
    // Predicated region
    $region34: #{tpu_custom_call.1} parent=1 // pred_check
      _
    $region35: #{tpu_custom_call.1} parent=1 // pred_check_branch
      %384 = sbr.rel (0) target = $region37
    $region36: #{tpu_custom_call.1} parent=1 // pred_region
      %385 = dma.done [#allocation4], 256
    $region37: #{tpu_custom_call.1} parent=1 // pred_fallthru
      _
    %386 = vsyncpa [#allocation3], 1
    %387 = vsyncpa [#allocation4], 1

</llo_original>
